<compile_context>
chip_gen: v5e
topology: v5e:2x2
jax: 0.10.0
libtpu: 0.0.40
codegen_flags: <defaults>
</compile_context>

<pallas_src>
import jax
import jax.numpy as jnp
from jax import lax
from jax.experimental import pallas as pl
from jax.experimental.pallas import tpu as pltpu

Activity_column = 7
Na_factor = 0.006

B, H, W = 2, 8, 6          # dna_data shape implied by Linear(300): 20*(H-3)*(W//2) = 300
CO = 20                    # conv3 out channels
KH, KW = 4, 4
HO, WP = 5, 3              # conv3 output height, pooled width
R = HO * WP                # 15 pooled spatial positions
LIN_IN = CO * R            # 300
LIN_PAD = 384              # 300 padded to a 128-lane boundary; last col is the bias hook
HOOK = LIN_PAD - 1         # 383
NA_COLS = 8
K_IN = 64                  # stage-1 K: [dna(48) | ones(8) | Na(8)]
BIG_K = 2 * LIN_PAD        # 768 = 6*128, stage-2 K (lane aligned)
BLOCK_B = 512              # batch block (rows per grid step)


def _fused_kernel(xflat_ref, na_ref, wab_ref, wbig_ref, out_ref):
    xf = xflat_ref[...].astype(jnp.float32)                               # [bb, 48]
    na = na_ref[...].astype(jnp.float32)                                  # [bb, 8]
    bb = xf.shape[0]

    # Stage 1: conv3 + replicate-pad + MaxPool2d((1,2)) + flatten as one matmul + max.
    # x64 = [dna | 1 | Na]; row 48 of wab is the bias/hook row, rows 56..63 pass Na
    # through the max() into cols 300..307 of x.
    ones = jnp.ones((bb, NA_COLS), jnp.float32)
    x64 = jnp.concatenate([xf, ones, na], axis=1)                         # [bb, 64]
    ab = jnp.dot(x64, wab_ref[...], preferred_element_type=jnp.float32)   # [bb, 768]
    x = jnp.maximum(ab[:, :LIN_PAD], ab[:, LIN_PAD:])                     # [bb, 384]
    # x cols 0..299 = pooled conv + bias, cols 300..307 = Na_data, 308..382 = 0, 383 = 1

    # Stage 2: Linear(300,3) on relu(x) plus the (unscaled) Na_net branch, fused into a
    # single lane-aligned [bb, 768] @ [768, 6] matmul; biases ride on the col-383 hook.
    big = jnp.concatenate([jnp.maximum(x, 0.0), x], axis=1)               # [bb, 768]
    y = jnp.dot(big, wbig_ref[...], preferred_element_type=jnp.float32)   # [bb, 6]

    # Epilogue: per-row log(activity)*Na_factor scale applied to 3 lanes only.
    scale = jnp.log(na[:, Activity_column:Activity_column + 1]) * Na_factor
    out_ref[...] = y[:, :3] + scale * y[:, 3:6]                           # [bb, 3]


def prepare_params(params):
    """One-time packing of module weights into two kernel-ready f32 matrices."""
    conv_w = params["conv3_w"].astype(jnp.float32)   # [20, 1, 4, 4]
    conv_b = params["conv3_b"].astype(jnp.float32)   # [20]
    lin_w = params["lin_w"].astype(jnp.float32)      # [3, 300]
    lin_b = params["lin_b"].astype(jnp.float32)      # [3]
    na_w = params["na_w"].astype(jnp.float32)        # [2, 308]
    na_b = params["na_b"].astype(jnp.float32)        # [2]

    # Fold im2col + conv3 (padding=(0,1)) into two [48, 300] linear maps via the 48
    # canonical basis images.
    eye = jnp.eye(H * W, dtype=jnp.float32).reshape(H * W, 1, H, W)
    basis = lax.conv_general_dilated(
        eye, conv_w, (1, 1), ((0, 0), (1, 1)),
        dimension_numbers=("NCHW", "OIHW", "NCHW"))                       # [48, 20, 5, 5]
    # After F.pad(..., (1,0,0,0), 'replicate'), MaxPool2d((1,2)) pairs conv columns
    # (0,0), (1,2), (3,4): column 0 intentionally appears in both pool members.
    left = jnp.take(basis, jnp.array([0, 1, 3]), axis=3)                  # [48, 20, 5, 3]
    right = jnp.take(basis, jnp.array([0, 2, 4]), axis=3)
    wa = left.reshape(H * W, LIN_IN)     # torch flatten order c*15 + h*3 + w
    wb = right.reshape(H * W, LIN_IN)

    # Stage-1 weight [64, 768] = [ left-half(384) | right-half(384) ]
    wab = jnp.zeros((K_IN, BIG_K), jnp.float32)
    wab = wab.at[:H * W, :LIN_IN].set(wa)
    wab = wab.at[:H * W, LIN_PAD:LIN_PAD + LIN_IN].set(wb)
    bias300 = jnp.repeat(conv_b, R)
    # row 48: conv bias in both halves (max(a+b, c+b) = max(a,c)+b) + 1.0 hook (left only)
    wab = wab.at[H * W, :LIN_IN].set(bias300)
    wab = wab.at[H * W, LIN_PAD:LIN_PAD + LIN_IN].set(bias300)
    wab = wab.at[H * W, HOOK].set(1.0)
    # rows 56..63: Na_data identity pass-through into cols 300..307 of both halves
    idx = jnp.arange(NA_COLS)
    wab = wab.at[H * W + NA_COLS + idx, LIN_IN + idx].set(1.0)
    wab = wab.at[H * W + NA_COLS + idx, LIN_PAD + LIN_IN + idx].set(1.0)

    # Stage-2 weight [768, 6]:
    #   rows   0..383 (relu half): cols 0..2 = Linear(300,3) weights; row 383 = lin_b
    #   rows 384..767 (raw half) : cols 4/5 = Na_net weights scattered to output cols
    #                              1/2 (unscaled); rows 684..691 = Na_data part;
    #                              row 767 = na_b.  Column 3 is identically zero.
    wbig = jnp.zeros((BIG_K, 6), jnp.float32)
    wbig = wbig.at[:LIN_IN, 0:3].set(lin_w.T)
    wbig = wbig.at[HOOK, 0:3].set(lin_b)
    wbig = wbig.at[LIN_PAD:LIN_PAD + LIN_IN, 4].set(na_w[1, :LIN_IN])
    wbig = wbig.at[LIN_PAD:LIN_PAD + LIN_IN, 5].set(na_w[0, :LIN_IN])
    wbig = wbig.at[LIN_PAD + LIN_IN:LIN_PAD + LIN_IN + NA_COLS, 4].set(na_w[1, LIN_IN:])
    wbig = wbig.at[LIN_PAD + LIN_IN:LIN_PAD + LIN_IN + NA_COLS, 5].set(na_w[0, LIN_IN:])
    wbig = wbig.at[LIN_PAD + HOOK, 4].set(na_b[1])
    wbig = wbig.at[LIN_PAD + HOOK, 5].set(na_b[0])

    return {"wab": wab, "wbig": wbig}


@jax.jit
def ne_multi_conv2d_net_28_04(dna_data, na_data, packed):
    """Per-call path: one (free) reshape + one pallas_call with 4 inputs."""
    b = dna_data.shape[0]
    xflat = dna_data.reshape(b, H * W)          # metadata-only reshape, stays f32
    bb = b if b <= BLOCK_B else BLOCK_B         # single full block for small batches
    grid = (pl.cdiv(b, bb),)
    return pl.pallas_call(
        _fused_kernel,
        out_shape=jax.ShapeDtypeStruct((b, 3), jnp.float32),
        grid_spec=pltpu.PrefetchScalarGridSpec(
            num_scalar_prefetch=0,
            grid=grid,
            in_specs=[
                pl.BlockSpec((bb, H * W), lambda i: (i, 0)),
                pl.BlockSpec((bb, NA_COLS), lambda i: (i, 0)),
                pl.BlockSpec((K_IN, BIG_K), lambda i: (0, 0)),
                pl.BlockSpec((BIG_K, 6), lambda i: (0, 0)),
            ],
            out_specs=pl.BlockSpec((bb, 3), lambda i: (i, 0)),
        ),
        compiler_params=pltpu.CompilerParams(
            dimension_semantics=("parallel",)),   # shard batch grid across v7x's 2 TCs
    )(xflat, na_data, packed["wab"], packed["wbig"])


def reference(dna_data, na_data, params):
    """Pure-JAX mirror of the PyTorch forward (f32 everywhere)."""
    w, bb = params["conv3_w"], params["conv3_b"]
    x = dna_data[:, None, :, :]
    conv = lax.conv_general_dilated(x, w, (1, 1), ((0, 0), (1, 1)),
                                    dimension_numbers=("NCHW", "OIHW", "NCHW"))
    conv = conv + bb[None, :, None, None]                                 # [B,20,5,5]
    conv = jnp.pad(conv, ((0, 0), (0, 0), (0, 0), (1, 0)), mode="edge")   # replicate pad
    pooled = conv.reshape(conv.shape[0], CO, HO, WP, 2).max(axis=-1)      # MaxPool2d((1,2))
    flat = pooled.reshape(conv.shape[0], LIN_IN)
    na_in = jnp.concatenate([flat, na_data], axis=1)
    na_out = na_in @ params["na_w"].T + params["na_b"]
    res = jnp.maximum(flat, 0.0) @ params["lin_w"].T + params["lin_b"]
    log_act = jnp.log(na_data[:, Activity_column])
    res = res.at[:, 2].add(na_out[:, 0] * log_act * Na_factor)
    res = res.at[:, 1].add(na_out[:, 1] * log_act * Na_factor)
    return res


def init_params(key):
    ks = jax.random.split(key, 6)
    return {
        "conv3_w": 0.1 * jax.random.normal(ks[0], (CO, 1, KH, KW), jnp.float32),
        "conv3_b": 0.1 * jax.random.normal(ks[1], (CO,), jnp.float32),
        "lin_w":   0.1 * jax.random.normal(ks[2], (3, LIN_IN), jnp.float32),
        "lin_b":   0.1 * jax.random.normal(ks[3], (3,), jnp.float32),
        "na_w":    0.1 * jax.random.normal(ks[4], (2, LIN_IN + NA_COLS), jnp.float32),
        "na_b":    0.1 * jax.random.normal(ks[5], (2,), jnp.float32),
    }


if __name__ == "__main__":
    key = jax.random.PRNGKey(0)
    kp, kd, kn = jax.random.split(key, 3)
    params = init_params(kp)
    dna = jax.random.normal(kd, (B, H, W), jnp.float32)
    # Activity column is fed to log(); keep Na_data strictly positive.
    na = jax.random.uniform(kn, (B, NA_COLS), jnp.float32, minval=0.5, maxval=1.5)

    packed = prepare_params(params)          # one-time weight packing
    out = jax.block_until_ready(ne_multi_conv2d_net_28_04(dna, na, packed))
    ref = reference(dna, na, params)
    if not jnp.allclose(out, ref, rtol=2e-2, atol=2e-2):
        raise SystemExit("mismatch: max abs diff %e"
                         % float(jnp.max(jnp.abs(out - ref))))
    print("KERNEL_OK")
</pallas_src>

<mosaic_0001>
module attributes {stable_mosaic.version = 11 : i64} {
  func.func @_fused_kernel(%arg0: i32, %arg1: memref<2x48xf32, #tpu.memory_space<vmem>>, %arg2: memref<2x8xf32, #tpu.memory_space<vmem>>, %arg3: memref<64x768xf32, #tpu.memory_space<vmem>>, %arg4: memref<768x6xf32, #tpu.memory_space<vmem>>, %arg5: memref<2x3xf32, #tpu.memory_space<vmem>>) attributes {dimension_semantics = [#tpu.dimension_semantics<parallel>], iteration_bounds = array<i64: 1>, scalar_prefetch = 0 : i64, scratch_operands = 0 : i64, tpu.core_type = #tpu.core_type<tc>, window_params = [{transform_indices = @transform_0, window_bounds = array<i64: 2, 48>}, {transform_indices = @transform_1, window_bounds = array<i64: 2, 8>}, {pipeline_mode = #tpu.pipeline_mode<synchronous>, transform_indices = @transform_2, window_bounds = array<i64: 64, 768>}, {pipeline_mode = #tpu.pipeline_mode<synchronous>, transform_indices = @transform_3, window_bounds = array<i64: 768, 6>}, {transform_indices = @transform_4, window_bounds = array<i64: 2, 3>}]} {
    %c0 = arith.constant 0 : index
    %c0_0 = arith.constant 0 : index
    %0 = vector.load %arg1[%c0, %c0_0] : memref<2x48xf32, #tpu.memory_space<vmem>>, vector<2x48xf32>
    %c0_1 = arith.constant 0 : index
    %c0_2 = arith.constant 0 : index
    %1 = vector.load %arg2[%c0_1, %c0_2] : memref<2x8xf32, #tpu.memory_space<vmem>>, vector<2x8xf32>
    %cst = arith.constant 1.000000e+00 : f32
    %2 = vector.broadcast %cst : f32 to vector<2x8xf32>
    %3 = tpu.concatenate %0, %2, %1 in 1 : vector<2x48xf32>, vector<2x8xf32>, vector<2x8xf32> -> vector<2x64xf32>
    %c0_3 = arith.constant 0 : index
    %c0_4 = arith.constant 0 : index
    %4 = vector.load %arg3[%c0_3, %c0_4] : memref<64x768xf32, #tpu.memory_space<vmem>>, vector<64x768xf32>
    %cst_5 = arith.constant dense<0.000000e+00> : vector<2x768xf32>
    %5 = tpu.matmul %3, %4, %cst_5 {dimension_numbers = #tpu.dot_dimension_numbers<[1], [0], [0], [1], [0, 0, 1, 1], [], []>} : vector<2x64xf32>, vector<64x768xf32>, vector<2x768xf32> -> vector<2x768xf32>
    %6 = vector.extract_strided_slice %5 {offsets = [0, 0], sizes = [2, 384], strides = [1, 1]} : vector<2x768xf32> to vector<2x384xf32>
    %7 = vector.extract_strided_slice %5 {offsets = [0, 384], sizes = [2, 384], strides = [1, 1]} : vector<2x768xf32> to vector<2x384xf32>
    %8 = arith.maximumf %6, %7 : vector<2x384xf32>
    %cst_6 = arith.constant 0.000000e+00 : f32
    %9 = vector.broadcast %cst_6 : f32 to vector<2x384xf32>
    %10 = arith.maximumf %8, %9 : vector<2x384xf32>
    %11 = tpu.concatenate %10, %8 in 1 : vector<2x384xf32>, vector<2x384xf32> -> vector<2x768xf32>
    %c0_7 = arith.constant 0 : index
    %c0_8 = arith.constant 0 : index
    %12 = vector.load %arg4[%c0_7, %c0_8] : memref<768x6xf32, #tpu.memory_space<vmem>>, vector<768x6xf32>
    %cst_9 = arith.constant dense<0.000000e+00> : vector<2x6xf32>
    %13 = tpu.matmul %11, %12, %cst_9 {dimension_numbers = #tpu.dot_dimension_numbers<[1], [0], [0], [1], [0, 0, 1, 1], [], []>} : vector<2x768xf32>, vector<768x6xf32>, vector<2x6xf32> -> vector<2x6xf32>
    %14 = vector.extract_strided_slice %1 {offsets = [0, 7], sizes = [2, 1], strides = [1, 1]} : vector<2x8xf32> to vector<2x1xf32>
    %15 = math.log %14 : vector<2x1xf32>
    %cst_10 = arith.constant 6.000000e-03 : f32
    %16 = vector.broadcast %cst_10 : f32 to vector<2x1xf32>
    %17 = arith.mulf %15, %16 : vector<2x1xf32>
    %18 = vector.extract_strided_slice %13 {offsets = [0, 0], sizes = [2, 3], strides = [1, 1]} : vector<2x6xf32> to vector<2x3xf32>
    %19 = vector.extract_strided_slice %13 {offsets = [0, 3], sizes = [2, 3], strides = [1, 1]} : vector<2x6xf32> to vector<2x3xf32>
    %20 = vector.broadcast %17 : vector<2x1xf32> to vector<2x3xf32>
    %21 = arith.mulf %20, %19 : vector<2x3xf32>
    %22 = arith.addf %18, %21 : vector<2x3xf32>
    %c0_11 = arith.constant 0 : index
    %c0_12 = arith.constant 0 : index
    %23 = vector.load %arg5[%c0_11, %c0_12] : memref<2x3xf32, #tpu.memory_space<vmem>>, vector<2x3xf32>
    tpu.vector_store %arg5[%c0_11, %c0_12], %22 {strides = array<i32>} : memref<2x3xf32, #tpu.memory_space<vmem>>, vector<2x3xf32>,
    return
  }
  func.func @transform_0(%arg0: i32) -> (i32, i32) {
    %c0_i32 = arith.constant 0 : i32
    %c0_i32_0 = arith.constant 0 : i32
    return %arg0, %c0_i32 : i32, i32
  }
  func.func @transform_1(%arg0: i32) -> (i32, i32) {
    %c0_i32 = arith.constant 0 : i32
    %c0_i32_0 = arith.constant 0 : i32
    return %arg0, %c0_i32 : i32, i32
  }
  func.func @transform_2(%arg0: i32) -> (i32, i32) {
    %c0_i32 = arith.constant 0 : i32
    %c0_i32_0 = arith.constant 0 : i32
    %c0_i32_1 = arith.constant 0 : i32
    return %c0_i32, %c0_i32_0 : i32, i32
  }
  func.func @transform_3(%arg0: i32) -> (i32, i32) {
    %c0_i32 = arith.constant 0 : i32
    %c0_i32_0 = arith.constant 0 : i32
    %c0_i32_1 = arith.constant 0 : i32
    return %c0_i32, %c0_i32_0 : i32, i32
  }
  func.func @transform_4(%arg0: i32) -> (i32, i32) {
    %c0_i32 = arith.constant 0 : i32
    %c0_i32_0 = arith.constant 0 : i32
    return %arg0, %c0_i32 : i32, i32
  }
}

</mosaic_0001>

<llo_original>
// kernel: ne_multi_conv2d_net_28_04.1
$region0: #{ne_multi_conv2d_net_28_04.1}
  #allocation0 [shape = 'u32[]', space=smem, size = 0x4, offset = 0x4, fixed_abs, tag = 'smem constant byte address 0x4 - core index']
  #allocation1 [shape = 'u32[72,128]{1,0:T(1,128)}', space=vmem, size = 0x9000, scoped, tag = 'internal scratch']
  %s0 = inlined_call_operand.vmem [shape: f32[2,48], index: 0, kind: input, shape index: {}]
  %s1 = inlined_call_operand.vmem [shape: f32[2,8], index: 1, kind: input, shape index: {}]
  %s2 = inlined_call_operand.vmem [shape: f32[64,768], index: 2, kind: input, shape index: {}]
  %s3 = inlined_call_operand.vmem [shape: f32[768,6], index: 3, kind: input, shape index: {}]
  %s4 = inlined_call_operand.hbm [shape: f32[2,3], index: 4, kind: output, shape index: {}]
  %s5 = sld [smem:[#allocation0]]
  $region26: #{ne_multi_conv2d_net_28_04.1} parent=0
    _
  %s7 = ssub.s32 1, %s5
  %s8 = scalar_select 0, %s7, %s5
  $region1: #{ne_multi_conv2d_net_28_04.1} parent=0
    #allocation2 [shape = 'u8[1024]{0}', space=vmem, size = 0x400, scoped, tag = 'output window, operand 0, single buffered']
    #allocation3 [shape = 's32[1]{0}', space=sflag, size = 0x4, scoped, tag = 'scoped memory for ne_multi_conv2d_net_28_04.1']
    %9 = vsyncpa [#allocation3], 0
    // Predicated region
    $region2: #{ne_multi_conv2d_net_28_04.1} parent=1 // pred_check
      _
    $region3: #{ne_multi_conv2d_net_28_04.1} parent=1 // pred_check_branch
      %11 = sbr.rel (0) target = $region5
    $region4: #{ne_multi_conv2d_net_28_04.1} parent=1 // pred_region
      _
    $region5: #{ne_multi_conv2d_net_28_04.1} parent=1 // pred_fallthru
      _
    // Predicated region
    $region6: #{ne_multi_conv2d_net_28_04.1} parent=1 // pred_check
      _
    $region7: #{ne_multi_conv2d_net_28_04.1} parent=1 // pred_check_branch
      %13 = sbr.rel (0) target = $region9
    $region8: #{ne_multi_conv2d_net_28_04.1} parent=1 // pred_region
      _
    $region9: #{ne_multi_conv2d_net_28_04.1} parent=1 // pred_fallthru
      _
    // Predicated region
    $region10: #{ne_multi_conv2d_net_28_04.1} parent=1 // pred_check
      _
    $region11: #{ne_multi_conv2d_net_28_04.1} parent=1 // pred_check_branch
      %15 = sbr.rel (0) target = $region13
    $region12: #{ne_multi_conv2d_net_28_04.1} parent=1 // pred_region
      _
    $region13: #{ne_multi_conv2d_net_28_04.1} parent=1 // pred_fallthru
      _
    // Predicated region
    $region14: #{ne_multi_conv2d_net_28_04.1} parent=1 // pred_check
      _
    $region15: #{ne_multi_conv2d_net_28_04.1} parent=1 // pred_check_branch
      %17 = sbr.rel (0) target = $region17
    $region16: #{ne_multi_conv2d_net_28_04.1} parent=1 // pred_region
      _
    $region17: #{ne_multi_conv2d_net_28_04.1} parent=1 // pred_fallthru
      _
    %v18 = vld [vmem:[%s0] sm:$0x3]
    %v19 = vld [vmem:[%s1] sm:$0x3]
    %21 = vrot.lane.b32.xlu0 %v19, 56
    %v22 = vpop.permute.xlu0 %21
    %vm24 = vcmask 392192
    %v25 = vsel %vm24, %v18, 1.0
    %vm26 = vcmask 457728
    %v27 = vsel %vm26, %v25, %v22
    %v28 = vld [vmem:[%s2] sm:$0xff]
    %v29 = vld [vmem:[%s2 + $0x8] sm:$0xff]
    %v30 = vld [vmem:[%s2 + $0x10] sm:$0xff]
    %v31 = vld [vmem:[%s2 + $0x18] sm:$0xff]
    %v32 = vld [vmem:[%s2 + $0x20] sm:$0xff]
    %v33 = vld [vmem:[%s2 + $0x28] sm:$0xff]
    %v34 = vld [vmem:[%s2 + $0x30] sm:$0xff]
    %v35 = vld [vmem:[%s2 + $0x38] sm:$0xff]
    %v36 = vld [vmem:[%s2 + $0x40] sm:$0xff]
    %v37 = vld [vmem:[%s2 + $0x48] sm:$0xff]
    %v38 = vld [vmem:[%s2 + $0x50] sm:$0xff]
    %v39 = vld [vmem:[%s2 + $0x58] sm:$0xff]
    %v40 = vld [vmem:[%s2 + $0x60] sm:$0xff]
    %v41 = vld [vmem:[%s2 + $0x68] sm:$0xff]
    %v42 = vld [vmem:[%s2 + $0x70] sm:$0xff]
    %v43 = vld [vmem:[%s2 + $0x78] sm:$0xff]
    %v44 = vld [vmem:[%s2 + $0x80] sm:$0xff]
    %v45 = vld [vmem:[%s2 + $0x88] sm:$0xff]
    %v46 = vld [vmem:[%s2 + $0x90] sm:$0xff]
    %v47 = vld [vmem:[%s2 + $0x98] sm:$0xff]
    %v48 = vld [vmem:[%s2 + $0xa0] sm:$0xff]
    %v49 = vld [vmem:[%s2 + $0xa8] sm:$0xff]
    %v50 = vld [vmem:[%s2 + $0xb0] sm:$0xff]
    %v51 = vld [vmem:[%s2 + $0xb8] sm:$0xff]
    %v52 = vld [vmem:[%s2 + $0xc0] sm:$0xff]
    %v53 = vld [vmem:[%s2 + $0xc8] sm:$0xff]
    %v54 = vld [vmem:[%s2 + $0xd0] sm:$0xff]
    %v55 = vld [vmem:[%s2 + $0xd8] sm:$0xff]
    %v56 = vld [vmem:[%s2 + $0xe0] sm:$0xff]
    %v57 = vld [vmem:[%s2 + $0xe8] sm:$0xff]
    %v58 = vld [vmem:[%s2 + $0xf0] sm:$0xff]
    %v59 = vld [vmem:[%s2 + $0xf8] sm:$0xff]
    %v60 = vld [vmem:[%s2 + $0x100] sm:$0xff]
    %v61 = vld [vmem:[%s2 + $0x108] sm:$0xff]
    %v62 = vld [vmem:[%s2 + $0x110] sm:$0xff]
    %v63 = vld [vmem:[%s2 + $0x118] sm:$0xff]
    %v64 = vld [vmem:[%s2 + $0x120] sm:$0xff]
    %v65 = vld [vmem:[%s2 + $0x128] sm:$0xff]
    %v66 = vld [vmem:[%s2 + $0x130] sm:$0xff]
    %v67 = vld [vmem:[%s2 + $0x138] sm:$0xff]
    %v68 = vld [vmem:[%s2 + $0x140] sm:$0xff]
    %v69 = vld [vmem:[%s2 + $0x148] sm:$0xff]
    %v70 = vld [vmem:[%s2 + $0x150] sm:$0xff]
    %v71 = vld [vmem:[%s2 + $0x158] sm:$0xff]
    %v72 = vld [vmem:[%s2 + $0x160] sm:$0xff]
    %v73 = vld [vmem:[%s2 + $0x168] sm:$0xff]
    %v74 = vld [vmem:[%s2 + $0x170] sm:$0xff]
    %v75 = vld [vmem:[%s2 + $0x178] sm:$0xff]
    %vm76 = vcmask 523264
    %v78 = vsel %vm76, %v27, 0
    %80 = vmatpush.msra.mxu0 0.0
    %81 = vmatpush.msra.mxu0 0.0
    %82 = vmatpush.msra.mxu0 0.0
    %83 = vmatpush.msra.mxu0 0.0
    %84 = vmatpush.msra.mxu0 0.0
    %85 = vmatpush.msra.mxu0 0.0
    %86 = vmatpush.msra.mxu0 0.0
    %87 = vmatpush.msra.mxu0 0.0
    %88 = vmatpush.msra.mxu0 %v70
    %89 = vmatpush.msra.mxu0 %v64
    %90 = vmatpush.msra.mxu0 %v58
    %91 = vmatpush.msra.mxu0 %v52
    %92 = vmatpush.msra.mxu0 %v46
    %93 = vmatpush.msra.mxu0 %v40
    %94 = vmatpush.msra.mxu0 %v34
    %95 = vmatpush.msra.mxu0 %v28
    %96 = vmatmul.f32.gmra.mxu0 %v78
    %v97 = vpop.f32.mrf.mxu0
    %v98 = vadd.f32 0.0, %v97
    %99 = vdwg.mxu0
    %100 = vmatpush.msra.mxu0 0.0
    %101 = vmatpush.msra.mxu0 0.0
    %102 = vmatpush.msra.mxu0 0.0
    %103 = vmatpush.msra.mxu0 0.0
    %104 = vmatpush.msra.mxu0 0.0
    %105 = vmatpush.msra.mxu0 0.0
    %106 = vmatpush.msra.mxu0 0.0
    %107 = vmatpush.msra.mxu0 0.0
    %108 = vmatpush.msra.mxu0 %v71
    %109 = vmatpush.msra.mxu0 %v65
    %110 = vmatpush.msra.mxu0 %v59
    %111 = vmatpush.msra.mxu0 %v53
    %112 = vmatpush.msra.mxu0 %v47
    %113 = vmatpush.msra.mxu0 %v41
    %114 = vmatpush.msra.mxu0 %v35
    %115 = vmatpush.msra.mxu0 %v29
    %116 = vmatmul.f32.gmra.mxu0 %v78
    %v117 = vpop.f32.mrf.mxu0
    %v118 = vadd.f32 0.0, %v117
    %119 = vdwg.mxu0
    %120 = vmatpush.msra.mxu0 0.0
    %121 = vmatpush.msra.mxu0 0.0
    %122 = vmatpush.msra.mxu0 0.0
    %123 = vmatpush.msra.mxu0 0.0
    %124 = vmatpush.msra.mxu0 0.0
    %125 = vmatpush.msra.mxu0 0.0
    %126 = vmatpush.msra.mxu0 0.0
    %127 = vmatpush.msra.mxu0 0.0
    %128 = vmatpush.msra.mxu0 %v72
    %129 = vmatpush.msra.mxu0 %v66
    %130 = vmatpush.msra.mxu0 %v60
    %131 = vmatpush.msra.mxu0 %v54
    %132 = vmatpush.msra.mxu0 %v48
    %133 = vmatpush.msra.mxu0 %v42
    %134 = vmatpush.msra.mxu0 %v36
    %135 = vmatpush.msra.mxu0 %v30
    %136 = vmatmul.f32.gmra.mxu0 %v78
    %v137 = vpop.f32.mrf.mxu0
    %v138 = vadd.f32 0.0, %v137
    %139 = vdwg.mxu0
    %140 = vmatpush.msra.mxu0 0.0
    %141 = vmatpush.msra.mxu0 0.0
    %142 = vmatpush.msra.mxu0 0.0
    %143 = vmatpush.msra.mxu0 0.0
    %144 = vmatpush.msra.mxu0 0.0
    %145 = vmatpush.msra.mxu0 0.0
    %146 = vmatpush.msra.mxu0 0.0
    %147 = vmatpush.msra.mxu0 0.0
    %148 = vmatpush.msra.mxu0 %v73
    %149 = vmatpush.msra.mxu0 %v67
    %150 = vmatpush.msra.mxu0 %v61
    %151 = vmatpush.msra.mxu0 %v55
    %152 = vmatpush.msra.mxu0 %v49
    %153 = vmatpush.msra.mxu0 %v43
    %154 = vmatpush.msra.mxu0 %v37
    %155 = vmatpush.msra.mxu0 %v31
    %156 = vmatmul.f32.gmra.mxu0 %v78
    %v157 = vpop.f32.mrf.mxu0
    %v158 = vadd.f32 0.0, %v157
    %159 = vdwg.mxu0
    %160 = vmatpush.msra.mxu0 0.0
    %161 = vmatpush.msra.mxu0 0.0
    %162 = vmatpush.msra.mxu0 0.0
    %163 = vmatpush.msra.mxu0 0.0
    %164 = vmatpush.msra.mxu0 0.0
    %165 = vmatpush.msra.mxu0 0.0
    %166 = vmatpush.msra.mxu0 0.0
    %167 = vmatpush.msra.mxu0 0.0
    %168 = vmatpush.msra.mxu0 %v74
    %169 = vmatpush.msra.mxu0 %v68
    %170 = vmatpush.msra.mxu0 %v62
    %171 = vmatpush.msra.mxu0 %v56
    %172 = vmatpush.msra.mxu0 %v50
    %173 = vmatpush.msra.mxu0 %v44
    %174 = vmatpush.msra.mxu0 %v38
    %175 = vmatpush.msra.mxu0 %v32
    %176 = vmatmul.f32.gmra.mxu0 %v78
    %v177 = vpop.f32.mrf.mxu0
    %v178 = vadd.f32 0.0, %v177
    %179 = vdwg.mxu0
    %180 = vmatpush.msra.mxu0 0.0
    %181 = vmatpush.msra.mxu0 0.0
    %182 = vmatpush.msra.mxu0 0.0
    %183 = vmatpush.msra.mxu0 0.0
    %184 = vmatpush.msra.mxu0 0.0
    %185 = vmatpush.msra.mxu0 0.0
    %186 = vmatpush.msra.mxu0 0.0
    %187 = vmatpush.msra.mxu0 0.0
    %188 = vmatpush.msra.mxu0 %v75
    %189 = vmatpush.msra.mxu0 %v69
    %190 = vmatpush.msra.mxu0 %v63
    %191 = vmatpush.msra.mxu0 %v57
    %192 = vmatpush.msra.mxu0 %v51
    %193 = vmatpush.msra.mxu0 %v45
    %194 = vmatpush.msra.mxu0 %v39
    %195 = vmatpush.msra.mxu0 %v33
    %196 = vmatmul.f32.gmra.mxu0 %v78
    %v197 = vpop.f32.mrf.mxu0
    %v198 = vadd.f32 0.0, %v197
    %199 = vdwg.mxu0
    %v200 = vmax.f32 %v98, %v158
    %v201 = vmax.f32 %v118, %v178
    %v202 = vmax.f32 %v138, %v198
    %v203 = vmax.f32 %v200, 0.0
    %v204 = vmax.f32 %v201, 0.0
    %v205 = vmax.f32 %v202, 0.0
    %v206 = vld [vmem:[%s3] sm:$0xff]
    %v207 = vld [vmem:[%s3 + $0x8] sm:$0xff]
    %v208 = vld [vmem:[%s3 + $0x10] sm:$0xff]
    %v209 = vld [vmem:[%s3 + $0x18] sm:$0xff]
    %v210 = vld [vmem:[%s3 + $0x20] sm:$0xff]
    %v211 = vld [vmem:[%s3 + $0x28] sm:$0xff]
    %v212 = vld [vmem:[%s3 + $0x30] sm:$0xff]
    %v213 = vld [vmem:[%s3 + $0x38] sm:$0xff]
    %v214 = vld [vmem:[%s3 + $0x40] sm:$0xff]
    %v215 = vld [vmem:[%s3 + $0x48] sm:$0xff]
    %v216 = vld [vmem:[%s3 + $0x50] sm:$0xff]
    %v217 = vld [vmem:[%s3 + $0x58] sm:$0xff]
    %v218 = vld [vmem:[%s3 + $0x60] sm:$0xff]
    %v219 = vld [vmem:[%s3 + $0x68] sm:$0xff]
    %v220 = vld [vmem:[%s3 + $0x70] sm:$0xff]
    %v221 = vld [vmem:[%s3 + $0x78] sm:$0xff]
    %v222 = vld [vmem:[%s3 + $0x80] sm:$0xff]
    %v223 = vld [vmem:[%s3 + $0x88] sm:$0xff]
    %v224 = vld [vmem:[%s3 + $0x90] sm:$0xff]
    %v225 = vld [vmem:[%s3 + $0x98] sm:$0xff]
    %v226 = vld [vmem:[%s3 + $0xa0] sm:$0xff]
    %v227 = vld [vmem:[%s3 + $0xa8] sm:$0xff]
    %v228 = vld [vmem:[%s3 + $0xb0] sm:$0xff]
    %v229 = vld [vmem:[%s3 + $0xb8] sm:$0xff]
    %v230 = vld [vmem:[%s3 + $0xc0] sm:$0xff]
    %v231 = vld [vmem:[%s3 + $0xc8] sm:$0xff]
    %v232 = vld [vmem:[%s3 + $0xd0] sm:$0xff]
    %v233 = vld [vmem:[%s3 + $0xd8] sm:$0xff]
    %v234 = vld [vmem:[%s3 + $0xe0] sm:$0xff]
    %v235 = vld [vmem:[%s3 + $0xe8] sm:$0xff]
    %v236 = vld [vmem:[%s3 + $0xf0] sm:$0xff]
    %v237 = vld [vmem:[%s3 + $0xf8] sm:$0xff]
    %v238 = vld [vmem:[%s3 + $0x100] sm:$0xff]
    %v239 = vld [vmem:[%s3 + $0x108] sm:$0xff]
    %v240 = vld [vmem:[%s3 + $0x110] sm:$0xff]
    %v241 = vld [vmem:[%s3 + $0x118] sm:$0xff]
    %v242 = vld [vmem:[%s3 + $0x120] sm:$0xff]
    %v243 = vld [vmem:[%s3 + $0x128] sm:$0xff]
    %v244 = vld [vmem:[%s3 + $0x130] sm:$0xff]
    %v245 = vld [vmem:[%s3 + $0x138] sm:$0xff]
    %v246 = vld [vmem:[%s3 + $0x140] sm:$0xff]
    %v247 = vld [vmem:[%s3 + $0x148] sm:$0xff]
    %v248 = vld [vmem:[%s3 + $0x150] sm:$0xff]
    %v249 = vld [vmem:[%s3 + $0x158] sm:$0xff]
    %v250 = vld [vmem:[%s3 + $0x160] sm:$0xff]
    %v251 = vld [vmem:[%s3 + $0x168] sm:$0xff]
    %v252 = vld [vmem:[%s3 + $0x170] sm:$0xff]
    %v253 = vld [vmem:[%s3 + $0x178] sm:$0xff]
    %v254 = vld [vmem:[%s3 + $0x180] sm:$0xff]
    %v255 = vld [vmem:[%s3 + $0x188] sm:$0xff]
    %v256 = vld [vmem:[%s3 + $0x190] sm:$0xff]
    %v257 = vld [vmem:[%s3 + $0x198] sm:$0xff]
    %v258 = vld [vmem:[%s3 + $0x1a0] sm:$0xff]
    %v259 = vld [vmem:[%s3 + $0x1a8] sm:$0xff]
    %v260 = vld [vmem:[%s3 + $0x1b0] sm:$0xff]
    %v261 = vld [vmem:[%s3 + $0x1b8] sm:$0xff]
    %v262 = vld [vmem:[%s3 + $0x1c0] sm:$0xff]
    %v263 = vld [vmem:[%s3 + $0x1c8] sm:$0xff]
    %v264 = vld [vmem:[%s3 + $0x1d0] sm:$0xff]
    %v265 = vld [vmem:[%s3 + $0x1d8] sm:$0xff]
    %v266 = vld [vmem:[%s3 + $0x1e0] sm:$0xff]
    %v267 = vld [vmem:[%s3 + $0x1e8] sm:$0xff]
    %v268 = vld [vmem:[%s3 + $0x1f0] sm:$0xff]
    %v269 = vld [vmem:[%s3 + $0x1f8] sm:$0xff]
    %v270 = vld [vmem:[%s3 + $0x200] sm:$0xff]
    %v271 = vld [vmem:[%s3 + $0x208] sm:$0xff]
    %v272 = vld [vmem:[%s3 + $0x210] sm:$0xff]
    %v273 = vld [vmem:[%s3 + $0x218] sm:$0xff]
    %v274 = vld [vmem:[%s3 + $0x220] sm:$0xff]
    %v275 = vld [vmem:[%s3 + $0x228] sm:$0xff]
    %v276 = vld [vmem:[%s3 + $0x230] sm:$0xff]
    %v277 = vld [vmem:[%s3 + $0x238] sm:$0xff]
    %v278 = vld [vmem:[%s3 + $0x240] sm:$0xff]
    %v279 = vld [vmem:[%s3 + $0x248] sm:$0xff]
    %v280 = vld [vmem:[%s3 + $0x250] sm:$0xff]
    %v281 = vld [vmem:[%s3 + $0x258] sm:$0xff]
    %v282 = vld [vmem:[%s3 + $0x260] sm:$0xff]
    %v283 = vld [vmem:[%s3 + $0x268] sm:$0xff]
    %v284 = vld [vmem:[%s3 + $0x270] sm:$0xff]
    %v285 = vld [vmem:[%s3 + $0x278] sm:$0xff]
    %v286 = vld [vmem:[%s3 + $0x280] sm:$0xff]
    %v287 = vld [vmem:[%s3 + $0x288] sm:$0xff]
    %v288 = vld [vmem:[%s3 + $0x290] sm:$0xff]
    %v289 = vld [vmem:[%s3 + $0x298] sm:$0xff]
    %v290 = vld [vmem:[%s3 + $0x2a0] sm:$0xff]
    %v291 = vld [vmem:[%s3 + $0x2a8] sm:$0xff]
    %v292 = vld [vmem:[%s3 + $0x2b0] sm:$0xff]
    %v293 = vld [vmem:[%s3 + $0x2b8] sm:$0xff]
    %v294 = vld [vmem:[%s3 + $0x2c0] sm:$0xff]
    %v295 = vld [vmem:[%s3 + $0x2c8] sm:$0xff]
    %v296 = vld [vmem:[%s3 + $0x2d0] sm:$0xff]
    %v297 = vld [vmem:[%s3 + $0x2d8] sm:$0xff]
    %v298 = vld [vmem:[%s3 + $0x2e0] sm:$0xff]
    %v299 = vld [vmem:[%s3 + $0x2e8] sm:$0xff]
    %v300 = vld [vmem:[%s3 + $0x2f0] sm:$0xff]
    %v301 = vld [vmem:[%s3 + $0x2f8] sm:$0xff]
    %302 = vmatpush.msra.mxu0 %v221
    %303 = vmatpush.msra.mxu0 %v220
    %304 = vmatpush.msra.mxu0 %v219
    %305 = vmatpush.msra.mxu0 %v218
    %306 = vmatpush.msra.mxu0 %v217
    %307 = vmatpush.msra.mxu0 %v216
    %308 = vmatpush.msra.mxu0 %v215
    %309 = vmatpush.msra.mxu0 %v214
    %310 = vmatpush.msra.mxu0 %v213
    %311 = vmatpush.msra.mxu0 %v212
    %312 = vmatpush.msra.mxu0 %v211
    %313 = vmatpush.msra.mxu0 %v210
    %314 = vmatpush.msra.mxu0 %v209
    %315 = vmatpush.msra.mxu0 %v208
    %316 = vmatpush.msra.mxu0 %v207
    %317 = vmatpush.msra.mxu0 %v206
    %318 = vmatmul.f32.gmra.mxu0 %v203
    %v319 = vpop.f32.mrf.mxu0
    %v320 = vadd.f32 0.0, %v319
    %321 = vdwg.mxu0
    %322 = vmatpush.msra.mxu0 %v237
    %323 = vmatpush.msra.mxu0 %v236
    %324 = vmatpush.msra.mxu0 %v235
    %325 = vmatpush.msra.mxu0 %v234
    %326 = vmatpush.msra.mxu0 %v233
    %327 = vmatpush.msra.mxu0 %v232
    %328 = vmatpush.msra.mxu0 %v231
    %329 = vmatpush.msra.mxu0 %v230
    %330 = vmatpush.msra.mxu0 %v229
    %331 = vmatpush.msra.mxu0 %v228
    %332 = vmatpush.msra.mxu0 %v227
    %333 = vmatpush.msra.mxu0 %v226
    %334 = vmatpush.msra.mxu0 %v225
    %335 = vmatpush.msra.mxu0 %v224
    %336 = vmatpush.msra.mxu0 %v223
    %337 = vmatpush.msra.mxu0 %v222
    %338 = vmatmul.f32.gmra.mxu0 %v204
    %v339 = vpop.f32.mrf.mxu0
    %v340 = vadd.f32 %v320, %v339
    %341 = vdwg.mxu0
    %342 = vmatpush.msra.mxu0 %v253
    %343 = vmatpush.msra.mxu0 %v252
    %344 = vmatpush.msra.mxu0 %v251
    %345 = vmatpush.msra.mxu0 %v250
    %346 = vmatpush.msra.mxu0 %v249
    %347 = vmatpush.msra.mxu0 %v248
    %348 = vmatpush.msra.mxu0 %v247
    %349 = vmatpush.msra.mxu0 %v246
    %350 = vmatpush.msra.mxu0 %v245
    %351 = vmatpush.msra.mxu0 %v244
    %352 = vmatpush.msra.mxu0 %v243
    %353 = vmatpush.msra.mxu0 %v242
    %354 = vmatpush.msra.mxu0 %v241
    %355 = vmatpush.msra.mxu0 %v240
    %356 = vmatpush.msra.mxu0 %v239
    %357 = vmatpush.msra.mxu0 %v238
    %358 = vmatmul.f32.gmra.mxu0 %v205
    %v359 = vpop.f32.mrf.mxu0
    %v360 = vadd.f32 %v340, %v359
    %361 = vdwg.mxu0
    %362 = vmatpush.msra.mxu0 %v269
    %363 = vmatpush.msra.mxu0 %v268
    %364 = vmatpush.msra.mxu0 %v267
    %365 = vmatpush.msra.mxu0 %v266
    %366 = vmatpush.msra.mxu0 %v265
    %367 = vmatpush.msra.mxu0 %v264
    %368 = vmatpush.msra.mxu0 %v263
    %369 = vmatpush.msra.mxu0 %v262
    %370 = vmatpush.msra.mxu0 %v261
    %371 = vmatpush.msra.mxu0 %v260
    %372 = vmatpush.msra.mxu0 %v259
    %373 = vmatpush.msra.mxu0 %v258
    %374 = vmatpush.msra.mxu0 %v257
    %375 = vmatpush.msra.mxu0 %v256
    %376 = vmatpush.msra.mxu0 %v255
    %377 = vmatpush.msra.mxu0 %v254
    %378 = vmatmul.f32.gmra.mxu0 %v200
    %v379 = vpop.f32.mrf.mxu0
    %v380 = vadd.f32 %v360, %v379
    %381 = vdwg.mxu0
    %382 = vmatpush.msra.mxu0 %v285
    %383 = vmatpush.msra.mxu0 %v284
    %384 = vmatpush.msra.mxu0 %v283
    %385 = vmatpush.msra.mxu0 %v282
    %386 = vmatpush.msra.mxu0 %v281
    %387 = vmatpush.msra.mxu0 %v280
    %388 = vmatpush.msra.mxu0 %v279
    %389 = vmatpush.msra.mxu0 %v278
    %390 = vmatpush.msra.mxu0 %v277
    %391 = vmatpush.msra.mxu0 %v276
    %392 = vmatpush.msra.mxu0 %v275
    %393 = vmatpush.msra.mxu0 %v274
    %394 = vmatpush.msra.mxu0 %v273
    %395 = vmatpush.msra.mxu0 %v272
    %396 = vmatpush.msra.mxu0 %v271
    %397 = vmatpush.msra.mxu0 %v270
    %398 = vmatmul.f32.gmra.mxu0 %v201
    %v399 = vpop.f32.mrf.mxu0
    %v400 = vadd.f32 %v380, %v399
    %401 = vdwg.mxu0
    %402 = vmatpush.msra.mxu0 %v301
    %403 = vmatpush.msra.mxu0 %v300
    %404 = vmatpush.msra.mxu0 %v299
    %405 = vmatpush.msra.mxu0 %v298
    %406 = vmatpush.msra.mxu0 %v297
    %407 = vmatpush.msra.mxu0 %v296
    %408 = vmatpush.msra.mxu0 %v295
    %409 = vmatpush.msra.mxu0 %v294
    %410 = vmatpush.msra.mxu0 %v293
    %411 = vmatpush.msra.mxu0 %v292
    %412 = vmatpush.msra.mxu0 %v291
    %413 = vmatpush.msra.mxu0 %v290
    %414 = vmatpush.msra.mxu0 %v289
    %415 = vmatpush.msra.mxu0 %v288
    %416 = vmatpush.msra.mxu0 %v287
    %417 = vmatpush.msra.mxu0 %v286
    %418 = vmatmul.f32.gmra.mxu0 %v202
    %v419 = vpop.f32.mrf.mxu0
    %v420 = vadd.f32 %v400, %v419
    %421 = vdwg.mxu0
    %v422 = vlog2.pop %v19
    %v423 = vmul.f32 %v422, 0.6931472
    %v424 = vmul.f32 %v423, 0.006
    %426 = vset.pattern.permute.xlu0 7
    %427 = vperm.xlu0 %426, %v424
    %v428 = vpop.permute.xlu0 %427
    %v430 = vmul.f32 %v428, %v420
    %432 = vrot.lane.b32.xlu0 %v430, 125
    %v433 = vpop.permute.xlu0 %432
    %v435 = vadd.f32 %v420, %v433
    %vm436 = vcmask 17408
    %437 = vst.msk [vmem:[#allocation2] sm:$0x3] %vm436, %v435
    // Predicated region
    $region18: #{ne_multi_conv2d_net_28_04.1} parent=1 // pred_check
      _
    $region19: #{ne_multi_conv2d_net_28_04.1} parent=1 // pred_check_branch
      %439 = sbr.rel (0) target = $region21
    $region20: #{ne_multi_conv2d_net_28_04.1} parent=1 // pred_region
      %441 = vsyncadd [#allocation3], 0
      %s443 = sshll.u32 [#allocation2], 4
      %s444 = int_to_ptr.vmem [resolvable:$true] %s443
      %s445 = sshll.u32 %s4, 4
      %s446 = int_to_ptr.hbm [resolvable:$true] %s445
      %448 = dma.vmem_to_hbm [thread:$0]  %s444, 32, %s446, [#allocation3]
    $region21: #{ne_multi_conv2d_net_28_04.1} parent=1 // pred_fallthru
      _
    // Predicated region
    $region22: #{ne_multi_conv2d_net_28_04.1} parent=1 // pred_check
      _
    $region23: #{ne_multi_conv2d_net_28_04.1} parent=1 // pred_check_branch
      %450 = sbr.rel (0) target = $region25
    $region24: #{ne_multi_conv2d_net_28_04.1} parent=1 // pred_region
      %452 = dma.done [#allocation3], 32
    $region25: #{ne_multi_conv2d_net_28_04.1} parent=1 // pred_fallthru
      _
    %453 = vsyncpa [#allocation3], 1

</llo_original>
